<compile_context>
chip_gen: v7x
topology: tpu7x:2x2x1
jax: 0.10.0
libtpu: 0.0.40
codegen_flags: <defaults>
</compile_context>

<pallas_src>
import numpy as np
import jax
import jax.numpy as jnp
from jax.experimental import pallas as pl
from jax.experimental.pallas import tpu as pltpu


def _round_up(v, m):
    return ((v + m - 1) // m) * m


# ----------------------------------------------------------------------------
# Small static matrices (built once on host, cached per spatial size)
# ----------------------------------------------------------------------------
def pool_matrix(out_size, in_size):
    """Adaptive average-pool as a (out_size, in_size) matrix (PyTorch regions)."""
    M = np.zeros((out_size, in_size), dtype=np.float32)
    for i in range(out_size):
        start = (i * in_size) // out_size
        end = -((-(i + 1) * in_size) // out_size)  # ceil((i+1)*in/out)
        M[i, start:end] = 1.0 / float(end - start)
    return M


def upsample_matrix(out_size, in_size):
    """Bilinear (align_corners=True) upsample as a (out_size, in_size) matrix."""
    M = np.zeros((out_size, in_size), dtype=np.float32)
    if in_size == 1:
        M[:, 0] = 1.0
        return M
    for o in range(out_size):
        pos = o * (in_size - 1) / (out_size - 1) if out_size > 1 else 0.0
        i0 = int(np.floor(pos))
        i1 = min(i0 + 1, in_size - 1)
        w1 = pos - i0
        w0 = 1.0 - w1
        M[o, i0] += w0
        M[o, i1] += w1
    return M


def _choose_channel_tile(C, kR):
    """Largest channel tile (mult of 8, <=256) dividing both C and kR."""
    for t in (256, 128, 64, 32, 16, 8):
        if C % t == 0 and kR % t == 0:
            return t
    # TODO(synk): ragged channel counts would need per-tile masking.
    raise NotImplementedError(
        "PPM Pallas kernel needs in_dim and len(bins)*reduction_dim to share a "
        "common channel tile that is a multiple of 8.")


# ----------------------------------------------------------------------------
# Pallas kernel: identity copy + all pyramid branches, fused output
# ----------------------------------------------------------------------------
def make_ppm_kernel(t_oc, n_id_tiles):
    """Kernel over grid (batch, output-channel tile).

    Tiles [0, n_id_tiles)       -> copy x rows into the output (identity concat).
    Tiles [n_id_tiles, n_tiles) -> pool -> 1x1 conv (BN folded) -> ReLU -> upsample.
    """

    def kernel(x_ref, pt_ref, ut_ref, w_ref, bias_ref, mask_ref, out_ref):
        j = pl.program_id(1)

        @pl.when(j < n_id_tiles)
        def _identity():
            if n_id_tiles == 1:
                # Whole identity region in one tile: straight copy.
                out_ref[0] = x_ref[0].astype(out_ref.dtype)
            else:
                off = pl.multiple_of(j * t_oc, t_oc)
                out_ref[0] = x_ref[0, pl.ds(off, t_oc), :].astype(out_ref.dtype)

        @pl.when(j >= n_id_tiles)
        def _branches():
            x = x_ref[0]                     # (C, HWp)       lane dim = HWp
            # Adaptive average pool over all bins at once: (C, Sp), K = HWp.
            pooled = jnp.dot(x, pt_ref[...], preferred_element_type=jnp.float32)
            # 1x1 conv (BN scale folded) for this output-channel tile: (t_oc, Sp).
            y = jnp.dot(w_ref[...], pooled.astype(w_ref.dtype),
                        preferred_element_type=jnp.float32)
            # Folded BN bias + ReLU (f32), keep only each branch's own bins.
            z = jnp.maximum(y + bias_ref[...], 0.0) * mask_ref[...]
            # Bilinear upsample for all branches: (t_oc, HWp), lane-dense store.
            up = jnp.dot(z.astype(ut_ref.dtype), ut_ref[...],
                         preferred_element_type=jnp.float32)
            out_ref[0] = up.astype(out_ref.dtype)

    return kernel


def ppm_fused(x_flat, PT, UT, Wf, bias, mask, *, t_oc):
    """Fused PPM forward; returns (N, C + kR, HWp) (identity channels first)."""
    N, C, HW_pad = x_flat.shape
    S_pad = PT.shape[1]
    kR = Wf.shape[0]
    n_id = C // t_oc
    n_br = kR // t_oc

    kernel = make_ppm_kernel(t_oc, n_id)

    def branch_blk(n, j):
        # Identity tiles don't use these operands; clamp to a valid block.
        return (jnp.maximum(j - n_id, 0), 0)

    return pl.pallas_call(
        kernel,
        out_shape=jax.ShapeDtypeStruct((N, C + kR, HW_pad), x_flat.dtype),
        grid=(N, n_id + n_br),
        in_specs=[
            pl.BlockSpec((1, C, HW_pad), lambda n, j: (n, 0, 0)),   # x (constant in j)
            pl.BlockSpec((HW_pad, S_pad), lambda n, j: (0, 0)),     # pool matrix
            pl.BlockSpec((S_pad, HW_pad), lambda n, j: (0, 0)),     # upsample matrix
            pl.BlockSpec((t_oc, C), branch_blk),                    # folded conv weight tile
            pl.BlockSpec((t_oc, 1), branch_blk),                    # folded BN bias tile
            pl.BlockSpec((t_oc, S_pad), branch_blk),                # block-diagonal mask tile
        ],
        out_specs=pl.BlockSpec((1, t_oc, HW_pad), lambda n, j: (n, j, 0)),
        compiler_params=pltpu.CompilerParams(
            # Batch and output-channel tiles are independent -> both parallel
            # (gives v7x's second TensorCore work even at small N).
            dimension_semantics=("parallel", "parallel"),
            # Above the scoped defaults on v5e (16 MiB) / v6e (32 MiB) and
            # <= physical VMEM on every generation (v7x = 64 MiB).
            vmem_limit_bytes=64 * 1024 * 1024),
    )(x_flat, PT, UT, Wf, bias, mask)


# ----------------------------------------------------------------------------
# PPM module (deterministic synthetic parameters)
# ----------------------------------------------------------------------------
class PPMPallas:
    def __init__(self, in_dim, reduction_dim, bins, key, io_dtype=jnp.float32):
        self.in_dim = in_dim
        self.reduction_dim = reduction_dim
        self.bins = tuple(bins)
        self.io_dtype = io_dtype
        eps = 1e-5

        self.kR = len(self.bins) * reduction_dim
        self.S = sum(b * b for b in self.bins)
        self.S_pad = _round_up(self.S, 128)
        self.t_oc = _choose_channel_tile(in_dim, self.kR)

        ws, scales, biases = [], [], []
        for _ in self.bins:
            key, kw = jax.random.split(key)
            # Conv2d(in_dim, reduction_dim, kernel_size=1, bias=False)
            w = jax.random.normal(kw, (reduction_dim, in_dim), jnp.float32) * 0.1
            # BatchNorm2d(reduction_dim) params (deterministic, inference mode)
            gamma = 1.0 + 0.05 * jnp.arange(reduction_dim, dtype=jnp.float32)
            beta = 0.01 * jnp.arange(reduction_dim, dtype=jnp.float32)
            running_mean = 0.02 * jnp.arange(reduction_dim, dtype=jnp.float32)
            running_var = 1.0 + 0.1 * jnp.arange(reduction_dim, dtype=jnp.float32)
            scale = gamma / jnp.sqrt(running_var + eps)
            bias = beta - running_mean * scale
            ws.append(w)
            scales.append(scale)
            biases.append(bias)

        # Fold BN scale into the conv weight on host; stack all branches.
        w_folded = jnp.concatenate([s[:, None] * w for w, s in zip(ws, scales)], axis=0)
        self.w_folded = w_folded.astype(io_dtype)                       # (kR, C)
        self.bias = jnp.concatenate(biases, axis=0)[:, None]            # (kR, 1) f32

        # Block-diagonal mask (padded bin dim): branch i's channels use only its bins.
        mask = np.zeros((self.kR, self.S_pad), dtype=np.float32)
        off = 0
        for i, b in enumerate(self.bins):
            mask[i * reduction_dim:(i + 1) * reduction_dim, off:off + b * b] = 1.0
            off += b * b
        self.mask = jnp.asarray(mask)                                    # (kR, Sp) f32

        # Unfolded per-branch params for the pure-JAX reference.
        self._ref_params = list(zip(ws, scales, biases))

        # Cache of Kronecker pooling / upsample matrices per spatial size.
        self._spatial_cache = {}

    def _spatial_matrices(self, H, W):
        key = (H, W)
        if key not in self._spatial_cache:
            HW = H * W
            HW_pad = _round_up(HW, 128)
            # Adaptive-avg-pool for every bin, flattened spatial: (S, HW).
            P_all = np.concatenate(
                [np.kron(pool_matrix(b, H), pool_matrix(b, W)) for b in self.bins],
                axis=0)
            # Bilinear align_corners=True upsample for every bin: (S, HW).
            U_all = np.concatenate(
                [np.kron(upsample_matrix(H, b), upsample_matrix(W, b)).T
                 for b in self.bins],
                axis=0)
            assert P_all.shape[0] == self.S
            # Zero-pad bin dim to S_pad and spatial dim to HW_pad (lane-dense).
            P_pad = np.zeros((self.S_pad, HW_pad), np.float32)
            P_pad[:self.S, :HW] = P_all
            U_pad = np.zeros((self.S_pad, HW_pad), np.float32)
            U_pad[:self.S, :HW] = U_all
            PT = jnp.asarray(P_pad.T, dtype=self.io_dtype)   # (HWp, Sp)
            UT = jnp.asarray(U_pad, dtype=self.io_dtype)     # (Sp, HWp)
            self._spatial_cache[key] = (PT, UT)
        return self._spatial_cache[key]

    def __call__(self, x):
        N, C, H, W = x.shape
        assert C == self.in_dim
        HW = H * W
        HW_pad = _round_up(HW, 128)
        PT, UT = self._spatial_matrices(H, W)

        x_flat = x.astype(self.io_dtype).reshape(N, C, HW)
        if HW_pad != HW:
            x_flat = jnp.pad(x_flat, ((0, 0), (0, 0), (0, HW_pad - HW)))

        out = ppm_fused(x_flat, PT, UT, self.w_folded, self.bias, self.mask,
                        t_oc=self.t_oc)
        if HW_pad != HW:
            out = out[:, :, :HW]
        # Channel order matches PyTorch: [x, branch_0, branch_1, ...].
        return out.reshape(N, C + self.kR, H, W)

    # pure-JAX reference (per-branch einsums, no kron / no Pallas) for sanity check
    def reference(self, x):
        N, C, H, W = x.shape
        outs = [x]
        for (w, scale, bias), b in zip(self._ref_params, self.bins):
            Ph = jnp.asarray(pool_matrix(b, H))
            Pw = jnp.asarray(pool_matrix(b, W))
            Uh = jnp.asarray(upsample_matrix(H, b))
            Uw = jnp.asarray(upsample_matrix(W, b))
            pooled = jnp.einsum('ph,nchw,qw->ncpq', Ph, x, Pw)
            y = jnp.einsum('rc,ncpq->nrpq', w, pooled)
            y = jnp.maximum(
                y * scale[None, :, None, None] + bias[None, :, None, None], 0.0)
            up = jnp.einsum('hp,nrpq,wq->nrhw', Uh, y, Uw)
            outs.append(up)
        return jnp.concatenate(outs, axis=1)


if __name__ == "__main__":
    key = jax.random.PRNGKey(0)
    key, kx, kp = jax.random.split(key, 3)

    # Small shapes consistent with the module: NCHW input.
    N, C, H, W = 2, 16, 16, 16
    reduction_dim = 8
    bins = (1, 2, 3, 6)

    x = jax.random.normal(kx, (N, C, H, W), jnp.float32)

    # f32 I/O instance (tight tolerance).
    ppm = PPMPallas(in_dim=C, reduction_dim=reduction_dim, bins=bins, key=kp)
    out = jax.block_until_ready(ppm(x))

    expected_channels = C + len(bins) * reduction_dim
    assert out.shape == (N, expected_channels, H, W), out.shape

    ref = jax.block_until_ready(ppm.reference(x))
    np.testing.assert_allclose(np.asarray(out), np.asarray(ref),
                               rtol=1e-4, atol=1e-5)

    # bf16 I/O instance (same params / key) — halves HBM traffic; loose tolerance.
    ppm_bf16 = PPMPallas(in_dim=C, reduction_dim=reduction_dim, bins=bins, key=kp,
                         io_dtype=jnp.bfloat16)
    out_bf16 = jax.block_until_ready(ppm_bf16(x))
    assert out_bf16.shape == (N, expected_channels, H, W), out_bf16.shape
    np.testing.assert_allclose(np.asarray(out_bf16.astype(jnp.float32)),
                               np.asarray(ref), rtol=5e-2, atol=5e-2)

    print("KERNEL_OK")
</pallas_src>

<mosaic_0001>
module attributes {stable_mosaic.version = 11 : i64} {
  func.func @kernel(%arg0: i32, %arg1: i32, %arg2: memref<1x16x256xf32, #tpu.memory_space<vmem>>, %arg3: memref<256x128xf32, #tpu.memory_space<vmem>>, %arg4: memref<128x256xf32, #tpu.memory_space<vmem>>, %arg5: memref<16x16xf32, #tpu.memory_space<vmem>>, %arg6: memref<16x1xf32, #tpu.memory_space<vmem>>, %arg7: memref<16x128xf32, #tpu.memory_space<vmem>>, %arg8: memref<1x16x256xf32, #tpu.memory_space<vmem>>) attributes {dimension_semantics = [#tpu.dimension_semantics<parallel>, #tpu.dimension_semantics<parallel>], iteration_bounds = array<i64: 2, 3>, scalar_prefetch = 0 : i64, scratch_operands = 0 : i64, tpu.core_type = #tpu.core_type<tc>, window_params = [{transform_indices = @transform_0, window_bounds = array<i64: 1, 16, 256>}, {pipeline_mode = #tpu.pipeline_mode<synchronous>, transform_indices = @transform_1, window_bounds = array<i64: 256, 128>}, {pipeline_mode = #tpu.pipeline_mode<synchronous>, transform_indices = @transform_2, window_bounds = array<i64: 128, 256>}, {transform_indices = @transform_3, window_bounds = array<i64: 16, 16>}, {transform_indices = @transform_4, window_bounds = array<i64: 16, 1>}, {transform_indices = @transform_5, window_bounds = array<i64: 16, 128>}, {transform_indices = @transform_6, window_bounds = array<i64: 1, 16, 256>}]} {
    %c1_i32 = arith.constant 1 : i32
    %0 = arith.cmpi slt, %arg1, %c1_i32 : i32
    %1 = arith.extui %0 : i1 to i32
    %c0_i32 = arith.constant 0 : i32
    %2 = arith.cmpi ne, %1, %c0_i32 : i32
    scf.if %2 {
      %c0 = arith.constant 0 : index
      %c0_2 = arith.constant 0 : index
      %c0_3 = arith.constant 0 : index
      %6 = vector.load %arg2[%c0, %c0_2, %c0_3] : memref<1x16x256xf32, #tpu.memory_space<vmem>>, vector<1x16x256xf32>
      %7 = vector.shape_cast %6 : vector<1x16x256xf32> to vector<16x256xf32>
      %c0_4 = arith.constant 0 : index
      %c0_5 = arith.constant 0 : index
      %c0_6 = arith.constant 0 : index
      %8 = vector.load %arg8[%c0_4, %c0_5, %c0_6] : memref<1x16x256xf32, #tpu.memory_space<vmem>>, vector<1x16x256xf32>
      %9 = vector.shape_cast %8 : vector<1x16x256xf32> to vector<16x256xf32>
      %10 = vector.shape_cast %7 : vector<16x256xf32> to vector<1x16x256xf32>
      tpu.vector_store %arg8[%c0_4, %c0_5, %c0_6], %10 {strides = array<i32>} : memref<1x16x256xf32, #tpu.memory_space<vmem>>, vector<1x16x256xf32>,
    } else {
    }
    %c1_i32_0 = arith.constant 1 : i32
    %3 = arith.cmpi sge, %arg1, %c1_i32_0 : i32
    %4 = arith.extui %3 : i1 to i32
    %c0_i32_1 = arith.constant 0 : i32
    %5 = arith.cmpi ne, %4, %c0_i32_1 : i32
    scf.if %5 {
      %c0 = arith.constant 0 : index
      %c0_2 = arith.constant 0 : index
      %c0_3 = arith.constant 0 : index
      %6 = vector.load %arg2[%c0, %c0_2, %c0_3] : memref<1x16x256xf32, #tpu.memory_space<vmem>>, vector<1x16x256xf32>
      %7 = vector.shape_cast %6 : vector<1x16x256xf32> to vector<16x256xf32>
      %c0_4 = arith.constant 0 : index
      %c0_5 = arith.constant 0 : index
      %8 = vector.load %arg3[%c0_4, %c0_5] : memref<256x128xf32, #tpu.memory_space<vmem>>, vector<256x128xf32>
      %cst = arith.constant dense<0.000000e+00> : vector<16x128xf32>
      %9 = tpu.matmul %7, %8, %cst {dimension_numbers = #tpu.dot_dimension_numbers<[1], [0], [0], [1], [0, 0, 1, 1], [], []>} : vector<16x256xf32>, vector<256x128xf32>, vector<16x128xf32> -> vector<16x128xf32>
      %c0_6 = arith.constant 0 : index
      %c0_7 = arith.constant 0 : index
      %10 = vector.load %arg5[%c0_6, %c0_7] : memref<16x16xf32, #tpu.memory_space<vmem>>, vector<16x16xf32>
      %cst_8 = arith.constant dense<0.000000e+00> : vector<16x128xf32>
      %11 = tpu.matmul %10, %9, %cst_8 {dimension_numbers = #tpu.dot_dimension_numbers<[1], [0], [0], [1], [0, 0, 1, 1], [], []>} : vector<16x16xf32>, vector<16x128xf32>, vector<16x128xf32> -> vector<16x128xf32>
      %c0_9 = arith.constant 0 : index
      %c0_10 = arith.constant 0 : index
      %12 = vector.load %arg6[%c0_9, %c0_10] : memref<16x1xf32, #tpu.memory_space<vmem>>, vector<16x1xf32>
      %13 = vector.broadcast %12 : vector<16x1xf32> to vector<16x128xf32>
      %14 = arith.addf %11, %13 : vector<16x128xf32>
      %cst_11 = arith.constant 0.000000e+00 : f32
      %15 = vector.broadcast %cst_11 : f32 to vector<16x128xf32>
      %16 = arith.maximumf %14, %15 : vector<16x128xf32>
      %c0_12 = arith.constant 0 : index
      %c0_13 = arith.constant 0 : index
      %17 = vector.load %arg7[%c0_12, %c0_13] : memref<16x128xf32, #tpu.memory_space<vmem>>, vector<16x128xf32>
      %18 = arith.mulf %16, %17 : vector<16x128xf32>
      %c0_14 = arith.constant 0 : index
      %c0_15 = arith.constant 0 : index
      %19 = vector.load %arg4[%c0_14, %c0_15] : memref<128x256xf32, #tpu.memory_space<vmem>>, vector<128x256xf32>
      %cst_16 = arith.constant dense<0.000000e+00> : vector<16x256xf32>
      %20 = tpu.matmul %18, %19, %cst_16 {dimension_numbers = #tpu.dot_dimension_numbers<[1], [0], [0], [1], [0, 0, 1, 1], [], []>} : vector<16x128xf32>, vector<128x256xf32>, vector<16x256xf32> -> vector<16x256xf32>
      %c0_17 = arith.constant 0 : index
      %c0_18 = arith.constant 0 : index
      %c0_19 = arith.constant 0 : index
      %21 = vector.load %arg8[%c0_17, %c0_18, %c0_19] : memref<1x16x256xf32, #tpu.memory_space<vmem>>, vector<1x16x256xf32>
      %22 = vector.shape_cast %21 : vector<1x16x256xf32> to vector<16x256xf32>
      %23 = vector.shape_cast %20 : vector<16x256xf32> to vector<1x16x256xf32>
      tpu.vector_store %arg8[%c0_17, %c0_18, %c0_19], %23 {strides = array<i32>} : memref<1x16x256xf32, #tpu.memory_space<vmem>>, vector<1x16x256xf32>,
    } else {
    }
    return
  }
  func.func @transform_0(%arg0: i32, %arg1: i32) -> (i32, i32, i32) {
    %c0_i32 = arith.constant 0 : i32
    %c0_i32_0 = arith.constant 0 : i32
    %c0_i32_1 = arith.constant 0 : i32
    return %arg0, %c0_i32, %c0_i32_0 : i32, i32, i32
  }
  func.func @transform_1(%arg0: i32, %arg1: i32) -> (i32, i32) {
    %c0_i32 = arith.constant 0 : i32
    %c0_i32_0 = arith.constant 0 : i32
    %c0_i32_1 = arith.constant 0 : i32
    return %c0_i32, %c0_i32_0 : i32, i32
  }
  func.func @transform_2(%arg0: i32, %arg1: i32) -> (i32, i32) {
    %c0_i32 = arith.constant 0 : i32
    %c0_i32_0 = arith.constant 0 : i32
    %c0_i32_1 = arith.constant 0 : i32
    return %c0_i32, %c0_i32_0 : i32, i32
  }
  func.func @transform_3(%arg0: i32, %arg1: i32) -> (i32, i32) {
    %c1_i32 = arith.constant 1 : i32
    %0 = arith.subi %arg1, %c1_i32 : i32
    %c0_i32 = arith.constant 0 : i32
    %1 = arith.maxsi %0, %c0_i32 : i32
    %c0_i32_0 = arith.constant 0 : i32
    %c0_i32_1 = arith.constant 0 : i32
    return %1, %c0_i32_0 : i32, i32
  }
  func.func @transform_4(%arg0: i32, %arg1: i32) -> (i32, i32) {
    %c1_i32 = arith.constant 1 : i32
    %0 = arith.subi %arg1, %c1_i32 : i32
    %c0_i32 = arith.constant 0 : i32
    %1 = arith.maxsi %0, %c0_i32 : i32
    %c0_i32_0 = arith.constant 0 : i32
    %c0_i32_1 = arith.constant 0 : i32
    return %1, %c0_i32_0 : i32, i32
  }
  func.func @transform_5(%arg0: i32, %arg1: i32) -> (i32, i32) {
    %c1_i32 = arith.constant 1 : i32
    %0 = arith.subi %arg1, %c1_i32 : i32
    %c0_i32 = arith.constant 0 : i32
    %1 = arith.maxsi %0, %c0_i32 : i32
    %c0_i32_0 = arith.constant 0 : i32
    %c0_i32_1 = arith.constant 0 : i32
    return %1, %c0_i32_0 : i32, i32
  }
  func.func @transform_6(%arg0: i32, %arg1: i32) -> (i32, i32, i32) {
    %c0_i32 = arith.constant 0 : i32
    %c0_i32_0 = arith.constant 0 : i32
    return %arg0, %arg1, %c0_i32 : i32, i32, i32
  }
}

</mosaic_0001>

<llo_original>
// kernel: tpu_custom_call.1
$region0: #{tpu_custom_call.1}
  #allocation0 [shape = 'u32[]', space=smem, size = 0x4, offset = 0x4, fixed_abs, tag = 'smem constant byte address 0x4 - core index']
  #allocation1 [shape = 'u32[144,128]{1,0:T(1,128)}', space=vmem, size = 0x12000, scoped, tag = 'internal scratch']
  %s0 = inlined_call_operand.hbm [shape: f32[2,16,256], index: 0, kind: input, shape index: {}]
  %s1 = inlined_call_operand.hbm [shape: f32[256,128], index: 1, kind: input, shape index: {}]
  %s2 = inlined_call_operand.hbm [shape: f32[128,256], index: 2, kind: input, shape index: {}]
  %s3 = inlined_call_operand.hbm [shape: f32[32,16], index: 3, kind: input, shape index: {}]
  %s4 = inlined_call_operand.hbm [shape: f32[32,1], index: 4, kind: input, shape index: {}]
  %s5 = inlined_call_operand.hbm [shape: f32[32,128], index: 5, kind: input, shape index: {}]
  %s6 = inlined_call_operand.hbm [shape: f32[2,48,256], index: 6, kind: output, shape index: {}]
  %s7 = sld [smem:[#allocation0]]
  $region89: #{tpu_custom_call.1} parent=0
    _
  %s9 = ssub.s32 1, %s7
  %s10 = scalar_select 0, %s9, %s7
  $region1: #{tpu_custom_call.1} parent=0
    #allocation2 [shape = 'u8[32768]{0}', space=vmem, size = 0x8000, scoped, tag = 'input window, operand 0']
    #allocation3 [shape = 's32[2]{0}', space=sflag, size = 0x8, scoped, tag = 'scoped memory for tpu_custom_call.1']
    #allocation4 [shape = 's32[2]{0}', space=sflag, size = 0x8, scoped, tag = 'scoped memory for tpu_custom_call.1']
    #allocation5 [shape = 'u8[131072]{0}', space=vmem, size = 0x20000, scoped, tag = 'input window, operand 1, single buffered']
    #allocation6 [shape = 's32[1]{0}', space=sflag, size = 0x4, scoped, tag = 'scoped memory for tpu_custom_call.1']
    #allocation7 [shape = 'u8[131072]{0}', space=vmem, size = 0x20000, scoped, tag = 'input window, operand 2, single buffered']
    #allocation8 [shape = 'u8[16384]{0}', space=vmem, size = 0x4000, scoped, tag = 'input window, operand 3']
    #allocation9 [shape = 's32[2]{0}', space=sflag, size = 0x8, scoped, tag = 'scoped memory for tpu_custom_call.1']
    #allocation10 [shape = 'u8[16384]{0}', space=vmem, size = 0x4000, scoped, tag = 'input window, operand 4']
    #allocation11 [shape = 'u8[16384]{0}', space=vmem, size = 0x4000, scoped, tag = 'input window, operand 5']
    #allocation12 [shape = 's32[2]{0}', space=sflag, size = 0x8, scoped, tag = 'scoped memory for tpu_custom_call.1']
    #allocation13 [shape = 'u8[32768]{0}', space=vmem, size = 0x8000, scoped, tag = 'output window, operand 0']
    %11 = vsyncpa [#allocation3], 0
    %s12 = scalar_lea.sflag [#allocation3], 1
    %13 = vsyncpa %s12, 0
    %14 = vsyncpa [#allocation6], 0
    %15 = vsyncpa [#allocation9], 0
    %s16 = scalar_lea.sflag [#allocation9], 1
    %17 = vsyncpa %s16, 0
    %18 = vsyncpa [#allocation12], 0
    %s19 = scalar_lea.sflag [#allocation12], 1
    %20 = vsyncpa %s19, 0
    %21 = vsyncpa [#allocation4], 0
    %s22 = scalar_lea.sflag [#allocation4], 1
    %23 = vsyncpa %s22, 0
    loop: start=0, step=1, limit=8
    $region2: #{tpu_custom_call.1} parent=1 // loop_pre_header
      _
    $region3: #{tpu_custom_call.1} parent=1 // loop_header
      %s25 = sphi 0, %s29
      %p26 = scmp.ge.s32.totalorder %s25, 8
      %s32 = sphi 0, %s44
      %s33 = sphi 0, %s40
      %s34 = sphi 0, %s32
      %s35 = sphi 0, %s33
      %s36 = sphi 0, %s34
      %s37 = sphi 0, %s35
      %s47 = sphi 0, %s49
      %s50 = sphi 0, %s47
      %s51 = sphi 0, %s50
      %s67 = sphi 0, %s51
      %s71 = sphi 0, %s71
      %s73 = sphi 0, %s71
      %s74 = sphi 0, %s73
      %s88 = sphi 0, %s74
      %s92 = sphi 0, %s92
      %s94 = sphi 0, %s92
      %s95 = sphi 0, %s94
      %s109 = sphi 0, %s95
      %s121 = sphi 0, %s123
      %s124 = sphi 0, %s121
      %s125 = sphi 0, %s124
      %s141 = sphi 0, %s125
      %s153 = sphi 0, %s155
      %s156 = sphi 0, %s153
      %s157 = sphi 0, %s156
      %s173 = sphi 0, %s157
      %s185 = sphi 0, %s187
      %s188 = sphi 0, %s185
      %s189 = sphi 0, %s188
      %s205 = sphi 0, %s189
      %s213 = sphi 0, %s215
      %s216 = sphi 0, %s213
      %s217 = sphi 0, %s216
      %s233 = sphi 0, %s217
    $region4: #{tpu_custom_call.1} parent=1 // loop_header_branch
      %28 = sbr.rel (%p26) target = $region8
    $region5: #{tpu_custom_call.1} parent=1 // loop_body
      %s30 = ssub.s32 %s25, 1
      %s31 = ssub.s32 %s25, 2
      %s38 = sadd.s32 1, %s33
      %p39 = scmp.ge.s32.totalorder %s38, 3
      %s40 = scalar_select %p39, 0, %s38
      %s41 = sadd.s32 1, %s32
      %s42 = scalar_select %p39, %s41, %s32
      %p43 = scmp.ge.s32.totalorder %s42, 2
      %s44 = scalar_select %p43, 0, %s42
      %s45 = ssub.s32 %s32, %s44
      %p46 = scmp.eq.s32.totalorder %s45, 0
      %s48 = sadd.s32 %s47, 1
      %s49 = scalar_select %p46, %s47, %s48
      %p52 = pneg %p46
      %p53 = scmp.eq.s32.totalorder %s25, 5
      %p54 = por %p52, %p53
      %p55 = scmp.ne.s32.totalorder %s47, %s50
      %p56 = scmp.eq.s32.totalorder %s25, 0
      %p57 = por %p55, %p56
      %p58 = scmp.ne.s32.totalorder %s47, %s50
      %p59 = scmp.eq.s32.totalorder %s30, 5
      %p60 = por %p58, %p59
      %p61 = scmp.ne.s32.totalorder %s50, %s51
      %p62 = scmp.eq.s32.totalorder %s30, 0
      %p63 = por %p61, %p62
      %p64 = scmp.ne.s32.totalorder %s50, %s51
      %p65 = scmp.eq.s32.totalorder %s31, 5
      %p66 = por %p64, %p65
      %p68 = scmp.ne.s32.totalorder %s51, %s67
      %p69 = scmp.eq.s32.totalorder %s31, 0
      %p70 = por %p68, %p69
      %s72 = sadd.s32 %s71, 1
      %p75 = scmp.eq.s32.totalorder %s25, 5
      %p76 = scmp.ne.s32.totalorder %s71, %s73
      %p77 = scmp.eq.s32.totalorder %s25, 0
      %p78 = por %p76, %p77
      %p79 = scmp.ne.s32.totalorder %s71, %s73
      %p80 = scmp.eq.s32.totalorder %s30, 5
      %p81 = por %p79, %p80
      %p82 = scmp.ne.s32.totalorder %s73, %s74
      %p83 = scmp.eq.s32.totalorder %s30, 0
      %p84 = por %p82, %p83
      %p85 = scmp.ne.s32.totalorder %s73, %s74
      %p86 = scmp.eq.s32.totalorder %s31, 5
      %p87 = por %p85, %p86
      %p89 = scmp.ne.s32.totalorder %s74, %s88
      %p90 = scmp.eq.s32.totalorder %s31, 0
      %p91 = por %p89, %p90
      %s93 = sadd.s32 %s92, 1
      %p96 = scmp.eq.s32.totalorder %s25, 5
      %p97 = scmp.ne.s32.totalorder %s92, %s94
      %p98 = scmp.eq.s32.totalorder %s25, 0
      %p99 = por %p97, %p98
      %p100 = scmp.ne.s32.totalorder %s92, %s94
      %p101 = scmp.eq.s32.totalorder %s30, 5
      %p102 = por %p100, %p101
      %p103 = scmp.ne.s32.totalorder %s94, %s95
      %p104 = scmp.eq.s32.totalorder %s30, 0
      %p105 = por %p103, %p104
      %p106 = scmp.ne.s32.totalorder %s94, %s95
      %p107 = scmp.eq.s32.totalorder %s31, 5
      %p108 = por %p106, %p107
      %p110 = scmp.ne.s32.totalorder %s95, %s109
      %p111 = scmp.eq.s32.totalorder %s31, 0
      %p112 = por %p110, %p111
      %s113 = ssub.s32 %s33, 1
      %p114 = scmp.gt.s32.totalorder %s113, 0
      %s115 = scalar_select %p114, %s113, 0
      %s116 = ssub.s32 %s40, 1
      %p117 = scmp.gt.s32.totalorder %s116, 0
      %s118 = scalar_select %p117, %s116, 0
      %s119 = ssub.s32 %s115, %s118
      %p120 = scmp.eq.s32.totalorder %s119, 0
      %s122 = sadd.s32 %s121, 1
      %s123 = scalar_select %p120, %s121, %s122
      %p126 = pneg %p120
      %p127 = scmp.eq.s32.totalorder %s25, 5
      %p128 = por %p126, %p127
      %p129 = scmp.ne.s32.totalorder %s121, %s124
      %p130 = scmp.eq.s32.totalorder %s25, 0
      %p131 = por %p129, %p130
      %p132 = scmp.ne.s32.totalorder %s121, %s124
      %p133 = scmp.eq.s32.totalorder %s30, 5
      %p134 = por %p132, %p133
      %p135 = scmp.ne.s32.totalorder %s124, %s125
      %p136 = scmp.eq.s32.totalorder %s30, 0
      %p137 = por %p135, %p136
      %p138 = scmp.ne.s32.totalorder %s124, %s125
      %p139 = scmp.eq.s32.totalorder %s31, 5
      %p140 = por %p138, %p139
      %p142 = scmp.ne.s32.totalorder %s125, %s141
      %p143 = scmp.eq.s32.totalorder %s31, 0
      %p144 = por %p142, %p143
      %s145 = ssub.s32 %s33, 1
      %p146 = scmp.gt.s32.totalorder %s145, 0
      %s147 = scalar_select %p146, %s145, 0
      %s148 = ssub.s32 %s40, 1
      %p149 = scmp.gt.s32.totalorder %s148, 0
      %s150 = scalar_select %p149, %s148, 0
      %s151 = ssub.s32 %s147, %s150
      %p152 = scmp.eq.s32.totalorder %s151, 0
      %s154 = sadd.s32 %s153, 1
      %s155 = scalar_select %p152, %s153, %s154
      %p158 = pneg %p152
      %p159 = scmp.eq.s32.totalorder %s25, 5
      %p160 = por %p158, %p159
      %p161 = scmp.ne.s32.totalorder %s153, %s156
      %p162 = scmp.eq.s32.totalorder %s25, 0
      %p163 = por %p161, %p162
      %p164 = scmp.ne.s32.totalorder %s153, %s156
      %p165 = scmp.eq.s32.totalorder %s30, 5
      %p166 = por %p164, %p165
      %p167 = scmp.ne.s32.totalorder %s156, %s157
      %p168 = scmp.eq.s32.totalorder %s30, 0
      %p169 = por %p167, %p168
      %p170 = scmp.ne.s32.totalorder %s156, %s157
      %p171 = scmp.eq.s32.totalorder %s31, 5
      %p172 = por %p170, %p171
      %p174 = scmp.ne.s32.totalorder %s157, %s173
      %p175 = scmp.eq.s32.totalorder %s31, 0
      %p176 = por %p174, %p175
      %s177 = ssub.s32 %s33, 1
      %p178 = scmp.gt.s32.totalorder %s177, 0
      %s179 = scalar_select %p178, %s177, 0
      %s180 = ssub.s32 %s40, 1
      %p181 = scmp.gt.s32.totalorder %s180, 0
      %s182 = scalar_select %p181, %s180, 0
      %s183 = ssub.s32 %s179, %s182
      %p184 = scmp.eq.s32.totalorder %s183, 0
      %s186 = sadd.s32 %s185, 1
      %s187 = scalar_select %p184, %s185, %s186
      %p190 = pneg %p184
      %p191 = scmp.eq.s32.totalorder %s25, 5
      %p192 = por %p190, %p191
      %p193 = scmp.ne.s32.totalorder %s185, %s188
      %p194 = scmp.eq.s32.totalorder %s25, 0
      %p195 = por %p193, %p194
      %p196 = scmp.ne.s32.totalorder %s185, %s188
      %p197 = scmp.eq.s32.totalorder %s30, 5
      %p198 = por %p196, %p197
      %p199 = scmp.ne.s32.totalorder %s188, %s189
      %p200 = scmp.eq.s32.totalorder %s30, 0
      %p201 = por %p199, %p200
      %p202 = scmp.ne.s32.totalorder %s188, %s189
      %p203 = scmp.eq.s32.totalorder %s31, 5
      %p204 = por %p202, %p203
      %p206 = scmp.ne.s32.totalorder %s189, %s205
      %p207 = scmp.eq.s32.totalorder %s31, 0
      %p208 = por %p206, %p207
      %s209 = ssub.s32 %s32, %s44
      %s210 = ssub.s32 %s33, %s40
      %s211 = sor.u32 %s209, %s210
      %p212 = scmp.eq.s32.totalorder %s211, 0
      %s214 = sadd.s32 %s213, 1
      %s215 = scalar_select %p212, %s213, %s214
      %p218 = pneg %p212
      %p219 = scmp.eq.s32.totalorder %s25, 5
      %p220 = por %p218, %p219
      %p221 = scmp.ne.s32.totalorder %s213, %s216
      %p222 = scmp.eq.s32.totalorder %s25, 0
      %p223 = por %p221, %p222
      %p224 = scmp.ne.s32.totalorder %s213, %s216
      %p225 = scmp.eq.s32.totalorder %s30, 5
      %p226 = por %p224, %p225
      %p227 = scmp.ne.s32.totalorder %s216, %s217
      %p228 = scmp.eq.s32.totalorder %s30, 0
      %p229 = por %p227, %p228
      %p230 = scmp.ne.s32.totalorder %s216, %s217
      %p231 = scmp.eq.s32.totalorder %s31, 5
      %p232 = por %p230, %p231
      %p234 = scmp.ne.s32.totalorder %s217, %s233
      %p235 = scmp.eq.s32.totalorder %s31, 0
      %p236 = por %p234, %p235
      %p237 = scmp.le.s32.totalorder 1, %s25
      %p238 = scmp.lt.s32.totalorder %s25, 7
      %p239 = pnand %p237, %p238
      %p240 = pneg %p239
      // Predicated region
      $region9: #{tpu_custom_call.1} parent=5 // pred_check
        _
      $region10: #{tpu_custom_call.1} parent=5 // pred_check_branch
        %242 = sbr.rel (%p239) target = $region12
      $region11: #{tpu_custom_call.1} parent=5 // pred_region
        %s243 = ssub.s32 %s25, 1
        // Predicated region
        $region13: #{tpu_custom_call.1} parent=11 // pred_check
          %p244 = pneg %p84
        $region14: #{tpu_custom_call.1} parent=11 // pred_check_branch
          %246 = sbr.rel (%p244) target = $region16
        $region15: #{tpu_custom_call.1} parent=11 // pred_region
          %s248 = ssub.s32 4096, 4096
          %249 = vsyncadd [#allocation6], %s248
          %s250 = sshll.u32 [#allocation5], 4
          %s251 = int_to_ptr.vmem [resolvable:$true] %s250
          %256 = dma.hbm_to_vmem [thread:$0]  %s1, 4096, %s251, [#allocation6], 128, 128, 8
        $region16: #{tpu_custom_call.1} parent=11 // pred_fallthru
          _
        // Predicated region
        $region17: #{tpu_custom_call.1} parent=11 // pred_check
          %p257 = pneg %p105
        $region18: #{tpu_custom_call.1} parent=11 // pred_check_branch
          %259 = sbr.rel (%p257) target = $region20
        $region19: #{tpu_custom_call.1} parent=11 // pred_region
          %s261 = ssub.s32 4096, 4096
          %262 = vsyncadd [#allocation6], %s261
          %s263 = sshll.u32 [#allocation7], 4
          %s264 = int_to_ptr.vmem [resolvable:$true] %s263
          %269 = dma.hbm_to_vmem [thread:$0]  %s2, 4096, %s264, [#allocation6], 256, 256, 16
        $region20: #{tpu_custom_call.1} parent=11 // pred_fallthru
          _
      $region12: #{tpu_custom_call.1} parent=5 // pred_fallthru
        _
      %p270 = scmp.lt.s32.totalorder %s25, 6
      // Predicated region
      $region21: #{tpu_custom_call.1} parent=5 // pred_check
        %p271 = pneg %p270
      $region22: #{tpu_custom_call.1} parent=5 // pred_check_branch
        %273 = sbr.rel (%p271) target = $region24
      $region23: #{tpu_custom_call.1} parent=5 // pred_region
        // Predicated region
        $region25: #{tpu_custom_call.1} parent=23 // pred_check
          %p274 = pneg %p57
        $region26: #{tpu_custom_call.1} parent=23 // pred_check_branch
          %276 = sbr.rel (%p274) target = $region28
        $region27: #{tpu_custom_call.1} parent=23 // pred_region
          %s277 = sand.u32 %s47, 1
          %s278 = scalar_lea.sflag [#allocation3], %s277
          %s279 = sand.u32 %s47, 1
          %s280 = smul.addr %s279, 32
          %s281 = scalar_lea.vmem [#allocation2], %s280
          %s283 = ssub.s32 512, 512
          %284 = vsyncadd %s278, %s283
          %s285 = smul.addr %s32, 4
          %s286 = smul.addr %s285, 128
          %s287 = scalar_lea.hbm %s0, %s286
          %s288 = sshll.u32 %s281, 4
          %s289 = int_to_ptr.vmem [resolvable:$true] %s288
          %294 = dma.hbm_to_vmem [thread:$0]  %s287, 512, %s289, %s278, 256, 256, 16
        $region28: #{tpu_custom_call.1} parent=23 // pred_fallthru
          _
        // Predicated region
        $region29: #{tpu_custom_call.1} parent=23 // pred_check
          %p295 = pneg %p131
        $region30: #{tpu_custom_call.1} parent=23 // pred_check_branch
          %297 = sbr.rel (%p295) target = $region32
        $region31: #{tpu_custom_call.1} parent=23 // pred_region
          %s298 = sand.u32 %s25, 1
          %s299 = scalar_lea.sflag [#allocation9], %s298
          %s300 = sand.u32 %s121, 1
          %s301 = smul.addr %s300, 16
          %s302 = scalar_lea.vmem [#allocation8], %s301
          %s303 = ssub.s32 %s33, 1
          %p304 = scmp.gt.s32.totalorder %s303, 0
          %s305 = scalar_select %p304, %s303, 0
          %s306 = smul.u32 2, %s305
          %s308 = ssub.s32 256, 256
          %309 = vsyncadd %s299, %s308
          %s310 = smul.addr %s306, 128
          %s311 = scalar_lea.hbm %s3, %s310
          %s312 = sshll.u32 %s302, 4
          %s313 = int_to_ptr.vmem [resolvable:$true] %s312
          %318 = dma.hbm_to_vmem [thread:$0]  %s311, 256, %s313, %s299, 128, 128, 8
        $region32: #{tpu_custom_call.1} parent=23 // pred_fallthru
          _
        // Predicated region
        $region33: #{tpu_custom_call.1} parent=23 // pred_check
          %p319 = pneg %p163
        $region34: #{tpu_custom_call.1} parent=23 // pred_check_branch
          %321 = sbr.rel (%p319) target = $region36
        $region35: #{tpu_custom_call.1} parent=23 // pred_region
          %s322 = sand.u32 %s25, 1
          %s323 = scalar_lea.sflag [#allocation9], %s322
          %s324 = sand.u32 %s153, 1
          %s325 = smul.addr %s324, 16
          %s326 = scalar_lea.vmem [#allocation10], %s325
          %s327 = ssub.s32 %s33, 1
          %p328 = scmp.gt.s32.totalorder %s327, 0
          %s329 = scalar_select %p328, %s327, 0
          %s330 = smul.u32 2, %s329
          %s332 = ssub.s32 256, 256
          %333 = vsyncadd %s323, %s332
          %s334 = smul.addr %s330, 128
          %s335 = scalar_lea.hbm %s4, %s334
          %s336 = sshll.u32 %s326, 4
          %s337 = int_to_ptr.vmem [resolvable:$true] %s336
          %342 = dma.hbm_to_vmem [thread:$0]  %s335, 256, %s337, %s323, 128, 128, 8
        $region36: #{tpu_custom_call.1} parent=23 // pred_fallthru
          _
        // Predicated region
        $region37: #{tpu_custom_call.1} parent=23 // pred_check
          %p343 = pneg %p195
        $region38: #{tpu_custom_call.1} parent=23 // pred_check_branch
          %345 = sbr.rel (%p343) target = $region40
        $region39: #{tpu_custom_call.1} parent=23 // pred_region
          %s346 = sand.u32 %s185, 1
          %s347 = scalar_lea.sflag [#allocation12], %s346
          %s348 = sand.u32 %s185, 1
          %s349 = smul.addr %s348, 16
          %s350 = scalar_lea.vmem [#allocation11], %s349
          %s351 = ssub.s32 %s33, 1
          %p352 = scmp.gt.s32.totalorder %s351, 0
          %s353 = scalar_select %p352, %s351, 0
          %s354 = smul.u32 2, %s353
          %s356 = ssub.s32 256, 256
          %357 = vsyncadd %s347, %s356
          %s358 = smul.addr %s354, 128
          %s359 = scalar_lea.hbm %s5, %s358
          %s360 = sshll.u32 %s350, 4
          %s361 = int_to_ptr.vmem [resolvable:$true] %s360
          %366 = dma.hbm_to_vmem [thread:$0]  %s359, 256, %s361, %s347, 128, 128, 8
        $region40: #{tpu_custom_call.1} parent=23 // pred_fallthru
          _
      $region24: #{tpu_custom_call.1} parent=5 // pred_fallthru
        _
      %p367 = scmp.le.s32.totalorder 1, %s25
      %p368 = scmp.lt.s32.totalorder %s25, 7
      %p369 = pnand %p367, %p368
      %p370 = pneg %p369
      // Predicated region
      $region41: #{tpu_custom_call.1} parent=5 // pred_check
        _
      $region42: #{tpu_custom_call.1} parent=5 // pred_check_branch
        %372 = sbr.rel (%p369) target = $region44
      $region43: #{tpu_custom_call.1} parent=5 // pred_region
        %s373 = ssub.s32 %s25, 1
        %s374 = sand.u32 %s50, 1
        %s375 = scalar_lea.sflag [#allocation3], %s374
        %s376 = sand.u32 %s50, 1
        %s377 = smul.addr %s376, 32
        %s378 = scalar_lea.vmem [#allocation2], %s377
        // Predicated region
        $region45: #{tpu_custom_call.1} parent=43 // pred_check
          %p379 = pneg %p63
        $region46: #{tpu_custom_call.1} parent=43 // pred_check_branch
          %381 = sbr.rel (%p379) target = $region48
        $region47: #{tpu_custom_call.1} parent=43 // pred_region
          %382 = dma.done %s375, 512
        $region48: #{tpu_custom_call.1} parent=43 // pred_fallthru
          _
        // Predicated region
        $region49: #{tpu_custom_call.1} parent=43 // pred_check
          %p383 = pneg %p84
        $region50: #{tpu_custom_call.1} parent=43 // pred_check_branch
          %385 = sbr.rel (%p383) target = $region52
        $region51: #{tpu_custom_call.1} parent=43 // pred_region
          %386 = dma.done [#allocation6], 4096
        $region52: #{tpu_custom_call.1} parent=43 // pred_fallthru
          _
        // Predicated region
        $region53: #{tpu_custom_call.1} parent=43 // pred_check
          %p387 = pneg %p105
        $region54: #{tpu_custom_call.1} parent=43 // pred_check_branch
          %389 = sbr.rel (%p387) target = $region56
        $region55: #{tpu_custom_call.1} parent=43 // pred_region
          %390 = dma.done [#allocation6], 4096
        $region56: #{tpu_custom_call.1} parent=43 // pred_fallthru
          _
        %s391 = sand.u32 %s30, 1
        %s392 = scalar_lea.sflag [#allocation9], %s391
        %s393 = sand.u32 %s124, 1
        %s394 = smul.addr %s393, 16
        %s395 = scalar_lea.vmem [#allocation8], %s394
        // Predicated region
        $region57: #{tpu_custom_call.1} parent=43 // pred_check
          %p396 = pneg %p137
        $region58: #{tpu_custom_call.1} parent=43 // pred_check_branch
          %398 = sbr.rel (%p396) target = $region60
        $region59: #{tpu_custom_call.1} parent=43 // pred_region
          %399 = dma.done %s392, 256
        $region60: #{tpu_custom_call.1} parent=43 // pred_fallthru
          _
        %s400 = sand.u32 %s30, 1
        %s401 = scalar_lea.sflag [#allocation9], %s400
        %s402 = sand.u32 %s156, 1
        %s403 = smul.addr %s402, 16
        %s404 = scalar_lea.vmem [#allocation10], %s403
        // Predicated region
        $region61: #{tpu_custom_call.1} parent=43 // pred_check
          %p405 = pneg %p169
        $region62: #{tpu_custom_call.1} parent=43 // pred_check_branch
          %407 = sbr.rel (%p405) target = $region64
        $region63: #{tpu_custom_call.1} parent=43 // pred_region
          %408 = dma.done %s401, 256
        $region64: #{tpu_custom_call.1} parent=43 // pred_fallthru
          _
        %s409 = sand.u32 %s188, 1
        %s410 = scalar_lea.sflag [#allocation12], %s409
        %s411 = sand.u32 %s188, 1
        %s412 = smul.addr %s411, 16
        %s413 = scalar_lea.vmem [#allocation11], %s412
        // Predicated region
        $region65: #{tpu_custom_call.1} parent=43 // pred_check
          %p414 = pneg %p201
        $region66: #{tpu_custom_call.1} parent=43 // pred_check_branch
          %416 = sbr.rel (%p414) target = $region68
        $region67: #{tpu_custom_call.1} parent=43 // pred_region
          %417 = dma.done %s410, 256
        $region68: #{tpu_custom_call.1} parent=43 // pred_fallthru
          _
        %s418 = sand.u32 %s50, 1
        %s419 = scalar_lea.sflag [#allocation3], %s418
        %s420 = sand.u32 %s50, 1
        %s421 = smul.addr %s420, 32
        %s422 = scalar_lea.vmem [#allocation2], %s421
        %p423 = pneg %p63
        %p424 = pneg %p60
        %p425 = pneg %p84
        %p426 = pneg %p81
        %p427 = pneg %p105
        %p428 = pneg %p102
        %s429 = sand.u32 %s30, 1
        %s430 = scalar_lea.sflag [#allocation9], %s429
        %s431 = sand.u32 %s124, 1
        %s432 = smul.addr %s431, 16
        %s433 = scalar_lea.vmem [#allocation8], %s432
        %p434 = pneg %p137
        %p435 = pneg %p134
        %s436 = sand.u32 %s30, 1
        %s437 = scalar_lea.sflag [#allocation9], %s436
        %s438 = sand.u32 %s156, 1
        %s439 = smul.addr %s438, 16
        %s440 = scalar_lea.vmem [#allocation10], %s439
        %p441 = pneg %p169
        %p442 = pneg %p166
        %s443 = sand.u32 %s188, 1
        %s444 = scalar_lea.sflag [#allocation12], %s443
        %s445 = sand.u32 %s188, 1
        %s446 = smul.addr %s445, 16
        %s447 = scalar_lea.vmem [#allocation11], %s446
        %p448 = pneg %p201
        %p449 = pneg %p198
        %p450 = pneg %p229
        %p451 = pneg %p226
        %s452 = sand.u32 %s216, 1
        %s453 = scalar_lea.sflag [#allocation4], %s452
        %s454 = sand.u32 %s216, 1
        %s455 = smul.addr %s454, 32
        %s456 = scalar_lea.vmem [#allocation13], %s455
        %s457 = ssub.s32 %s35, 1
        %p458 = scmp.gt.s32.totalorder %s457, 0
        %s459 = scalar_select %p458, %s457, 0
        %s460 = smul.u32 2, %s459
        %s461 = ssub.s32 %s35, 1
        %p462 = scmp.gt.s32.totalorder %s461, 0
        %s463 = scalar_select %p462, %s461, 0
        %s464 = smul.u32 2, %s463
        %s465 = ssub.s32 %s35, 1
        %p466 = scmp.gt.s32.totalorder %s465, 0
        %s467 = scalar_select %p466, %s465, 0
        %s468 = smul.u32 2, %s467
        %s469 = smul.u32 2, %s35
        %p470 = scmp.lt.s32.totalorder %s35, 1
        // Predicated region
        $region69: #{tpu_custom_call.1} parent=43 // pred_check
          %p471 = pneg %p470
        $region70: #{tpu_custom_call.1} parent=43 // pred_check_branch
          %473 = sbr.rel (%p471) target = $region72
        $region71: #{tpu_custom_call.1} parent=43 // pred_region
          %v474 = vld [vmem:[%s378] sm:$0xff]
          %v475 = vld [vmem:[%s378 + $0x8] sm:$0xff]
          %v476 = vld [vmem:[%s378 + $0x10] sm:$0xff]
          %v477 = vld [vmem:[%s378 + $0x18] sm:$0xff]
          %478 = vst [vmem:[%s456] sm:$0xff] %v474
          %479 = vst [vmem:[%s456 + $0x8] sm:$0xff] %v475
          %480 = vst [vmem:[%s456 + $0x10] sm:$0xff] %v476
          %481 = vst [vmem:[%s456 + $0x18] sm:$0xff] %v477
        $region72: #{tpu_custom_call.1} parent=43 // pred_fallthru
          _
        %p482 = scmp.ge.s32.totalorder %s35, 1
        // Predicated region
        $region73: #{tpu_custom_call.1} parent=43 // pred_check
          %p483 = pneg %p482
        $region74: #{tpu_custom_call.1} parent=43 // pred_check_branch
          %485 = sbr.rel (%p483) target = $region76
        $region75: #{tpu_custom_call.1} parent=43 // pred_region
          %v486 = vld [vmem:[%s378] sm:$0xff]
          %v487 = vld [vmem:[%s378 + $0x8] sm:$0xff]
          %v488 = vld [vmem:[%s378 + $0x10] sm:$0xff]
          %v489 = vld [vmem:[%s378 + $0x18] sm:$0xff]
          %v490 = vld [vmem:[#allocation5] sm:$0xff]
          %v491 = vld [vmem:[#allocation5 + $0x8] sm:$0xff]
          %v492 = vld [vmem:[#allocation5 + $0x10] sm:$0xff]
          %v493 = vld [vmem:[#allocation5 + $0x18] sm:$0xff]
          %v494 = vld [vmem:[#allocation5 + $0x20] sm:$0xff]
          %v495 = vld [vmem:[#allocation5 + $0x28] sm:$0xff]
          %v496 = vld [vmem:[#allocation5 + $0x30] sm:$0xff]
          %v497 = vld [vmem:[#allocation5 + $0x38] sm:$0xff]
          %v498 = vld [vmem:[#allocation5 + $0x40] sm:$0xff]
          %v499 = vld [vmem:[#allocation5 + $0x48] sm:$0xff]
          %v500 = vld [vmem:[#allocation5 + $0x50] sm:$0xff]
          %v501 = vld [vmem:[#allocation5 + $0x58] sm:$0xff]
          %v502 = vld [vmem:[#allocation5 + $0x60] sm:$0xff]
          %v503 = vld [vmem:[#allocation5 + $0x68] sm:$0xff]
          %v504 = vld [vmem:[#allocation5 + $0x70] sm:$0xff]
          %v505 = vld [vmem:[#allocation5 + $0x78] sm:$0xff]
          %v506 = vld [vmem:[#allocation5 + $0x80] sm:$0xff]
          %v507 = vld [vmem:[#allocation5 + $0x88] sm:$0xff]
          %v508 = vld [vmem:[#allocation5 + $0x90] sm:$0xff]
          %v509 = vld [vmem:[#allocation5 + $0x98] sm:$0xff]
          %v510 = vld [vmem:[#allocation5 + $0xa0] sm:$0xff]
          %v511 = vld [vmem:[#allocation5 + $0xa8] sm:$0xff]
          %v512 = vld [vmem:[#allocation5 + $0xb0] sm:$0xff]
          %v513 = vld [vmem:[#allocation5 + $0xb8] sm:$0xff]
          %v514 = vld [vmem:[#allocation5 + $0xc0] sm:$0xff]
          %v515 = vld [vmem:[#allocation5 + $0xc8] sm:$0xff]
          %v516 = vld [vmem:[#allocation5 + $0xd0] sm:$0xff]
          %v517 = vld [vmem:[#allocation5 + $0xd8] sm:$0xff]
          %v518 = vld [vmem:[#allocation5 + $0xe0] sm:$0xff]
          %v519 = vld [vmem:[#allocation5 + $0xe8] sm:$0xff]
          %v520 = vld [vmem:[#allocation5 + $0xf0] sm:$0xff]
          %v521 = vld [vmem:[#allocation5 + $0xf8] sm:$0xff]
          %522 = vmatprep.subr.mxu0 0.0
          %523 = vmatpush1.msra.mxu0 %v490
          %524 = vmatprep.subr.mxu0 0.0
          %525 = vmatpush1.msra.mxu0 %v491
          %526 = vmatprep.subr.mxu0 0.0
          %527 = vmatpush1.msra.mxu0 %v492
          %528 = vmatprep.subr.mxu0 0.0
          %529 = vmatpush1.msra.mxu0 %v493
          %530 = vmatprep.subr.mxu0 0.0
          %531 = vmatpush1.msra.mxu0 %v494
          %532 = vmatprep.subr.mxu0 0.0
          %533 = vmatpush1.msra.mxu0 %v495
          %534 = vmatprep.subr.mxu0 0.0
          %535 = vmatpush1.msra.mxu0 %v496
          %536 = vmatprep.subr.mxu0 0.0
          %537 = vmatpush1.msra.mxu0 %v497
          %538 = vmatprep.subr.mxu0 0.0
          %539 = vmatpush1.msra.mxu0 %v498
          %540 = vmatprep.subr.mxu0 0.0
          %541 = vmatpush1.msra.mxu0 %v499
          %542 = vmatprep.subr.mxu0 0.0
          %543 = vmatpush1.msra.mxu0 %v500
          %544 = vmatprep.subr.mxu0 0.0
          %545 = vmatpush1.msra.mxu0 %v501
          %546 = vmatprep.subr.mxu0 0.0
          %547 = vmatpush1.msra.mxu0 %v502
          %548 = vmatprep.subr.mxu0 0.0
          %549 = vmatpush1.msra.mxu0 %v503
          %550 = vmatprep.subr.mxu0 0.0
          %551 = vmatpush1.msra.mxu0 %v504
          %552 = vmatprep.subr.mxu0 0.0
          %553 = vmatpush1.msra.mxu0 %v505
          %554 = vmatprep.subr.mxu0 0.0
          %555 = vmatpush1.msra.mxu0 %v506
          %556 = vmatprep.subr.mxu0 0.0
          %557 = vmatpush1.msra.mxu0 %v507
          %558 = vmatprep.subr.mxu0 0.0
          %559 = vmatpush1.msra.mxu0 %v508
          %560 = vmatprep.subr.mxu0 0.0
          %561 = vmatpush1.msra.mxu0 %v509
          %562 = vmatprep.subr.mxu0 0.0
          %563 = vmatpush1.msra.mxu0 %v510
          %564 = vmatprep.subr.mxu0 0.0
          %565 = vmatpush1.msra.mxu0 %v511
          %566 = vmatprep.subr.mxu0 0.0
          %567 = vmatpush1.msra.mxu0 %v512
          %568 = vmatprep.subr.mxu0 0.0
          %569 = vmatpush1.msra.mxu0 %v513
          %570 = vmatprep.subr.mxu0 0.0
          %571 = vmatpush1.msra.mxu0 %v514
          %572 = vmatprep.subr.mxu0 0.0
          %573 = vmatpush1.msra.mxu0 %v515
          %574 = vmatprep.subr.mxu0 0.0
          %575 = vmatpush1.msra.mxu0 %v516
          %576 = vmatprep.subr.mxu0 0.0
          %577 = vmatpush1.msra.mxu0 %v517
          %578 = vmatprep.subr.mxu0 0.0
          %579 = vmatpush1.msra.mxu0 %v518
          %580 = vmatprep.subr.mxu0 0.0
          %581 = vmatpush1.msra.mxu0 %v519
          %582 = vmatprep.subr.mxu0 0.0
          %583 = vmatpush1.msra.mxu0 %v520
          %584 = vmatprep.subr.mxu0 0.0
          %585 = vmatpush1.msra.mxu0 %v521
          %586 = vmatprep.mubr.f32.mxu0 %v487
          %587 = vmatmul.mubr.f32.gmra.mrb[0].mxu0 %v486
          %v588 = vpop.f32.mrb[0].mxu0
          %v589 = vadd.f32 0.0, %v588
          %v590 = vpop.f32.mrb[0].mxu0
          %591 = vmatprep.mubr.f32.mxu0 %v489
          %592 = vmatmul.mubr.f32.gmra.mrb[0].mxu0 %v488
          %v593 = vpop.f32.mrb[0].mxu0
          %v594 = vadd.f32 0.0, %v593
          %v595 = vpop.f32.mrb[0].mxu0
          %596 = vdwg.mxu0
          %v597 = vld [vmem:[%s395] sm:$0xff]
          %v598 = vld [vmem:[%s395 + $0x8] sm:$0xff]
          %v599 = vld [vmem:[%s404] sm:$0xff]
          %v600 = vld [vmem:[%s404 + $0x8] sm:$0xff]
          %602 = vset.pattern.permute.xlu0 0
          %603 = vperm.xlu0 %602, %v599
          %v604 = vpop.permute.xlu0 %603
          %607 = vset.pattern.permute.xlu0 0
          %608 = vperm.xlu0 %607, %v600
          %v609 = vpop.permute.xlu0 %608
          %vm611 = vcmask 130048
          %v613 = vsel %vm611, %v597, 0
          %v616 = vsel %vm611, %v598, 0
          %618 = vmatprep.subr.mxu0 0.0
          %619 = vmatpush1.msra.mxu0 %v589
          %620 = vmatprep.subr.mxu0 0.0
          %621 = vmatpush1.msra.mxu0 %v594
          %622 = vmatprep.subr.mxu0 0.0
          %623 = vmatpush1.msra.mxu0 0.0
          %624 = vmatprep.subr.mxu0 0.0
          %625 = vmatpush1.msra.mxu0 0.0
          %626 = vmatprep.subr.mxu0 0.0
          %627 = vmatpush1.msra.mxu0 0.0
          %628 = vmatprep.subr.mxu0 0.0
          %629 = vmatpush1.msra.mxu0 0.0
          %630 = vmatprep.subr.mxu0 0.0
          %631 = vmatpush1.msra.mxu0 0.0
          %632 = vmatprep.subr.mxu0 0.0
          %633 = vmatpush1.msra.mxu0 0.0
          %634 = vmatprep.subr.mxu0 0.0
          %635 = vmatpush1.msra.mxu0 0.0
          %636 = vmatprep.subr.mxu0 0.0
          %637 = vmatpush1.msra.mxu0 0.0
          %638 = vmatprep.subr.mxu0 0.0
          %639 = vmatpush1.msra.mxu0 0.0
          %640 = vmatprep.subr.mxu0 0.0
          %641 = vmatpush1.msra.mxu0 0.0
          %642 = vmatprep.subr.mxu0 0.0
          %643 = vmatpush1.msra.mxu0 0.0
          %644 = vmatprep.subr.mxu0 0.0
          %645 = vmatpush1.msra.mxu0 0.0
          %646 = vmatprep.subr.mxu0 0.0
          %647 = vmatpush1.msra.mxu0 0.0
          %648 = vmatprep.subr.mxu0 0.0
          %649 = vmatpush1.msra.mxu0 0.0
          %650 = vmatprep.subr.mxu0 0.0
          %651 = vmatpush1.msra.mxu0 0.0
          %652 = vmatprep.subr.mxu0 0.0
          %653 = vmatpush1.msra.mxu0 0.0
          %654 = vmatprep.subr.mxu0 0.0
          %655 = vmatpush1.msra.mxu0 0.0
          %656 = vmatprep.subr.mxu0 0.0
          %657 = vmatpush1.msra.mxu0 0.0
          %658 = vmatprep.subr.mxu0 0.0
          %659 = vmatpush1.msra.mxu0 0.0
          %660 = vmatprep.subr.mxu0 0.0
          %661 = vmatpush1.msra.mxu0 0.0
          %662 = vmatprep.subr.mxu0 0.0
          %663 = vmatpush1.msra.mxu0 0.0
          %664 = vmatprep.subr.mxu0 0.0
          %665 = vmatpush1.msra.mxu0 0.0
          %666 = vmatprep.subr.mxu0 0.0
          %667 = vmatpush1.msra.mxu0 0.0
          %668 = vmatprep.subr.mxu0 0.0
          %669 = vmatpush1.msra.mxu0 0.0
          %670 = vmatprep.subr.mxu0 0.0
          %671 = vmatpush1.msra.mxu0 0.0
          %672 = vmatprep.subr.mxu0 0.0
          %673 = vmatpush1.msra.mxu0 0.0
          %674 = vmatprep.subr.mxu0 0.0
          %675 = vmatpush1.msra.mxu0 0.0
          %676 = vmatprep.subr.mxu0 0.0
          %677 = vmatpush1.msra.mxu0 0.0
          %678 = vmatprep.subr.mxu0 0.0
          %679 = vmatpush1.msra.mxu0 0.0
          %680 = vmatprep.subr.mxu0 0.0
          %681 = vmatpush1.msra.mxu0 0.0
          %682 = vmatprep.mubr.f32.mxu0 0.0
          %683 = vmatmul.mubr.f32.gmra.mrb[0].mxu0 %v613
          %v684 = vpop.f32.mrb[0].mxu0
          %v685 = vadd.f32 %v604, %v684
          %v686 = vpop.f32.mrb[0].mxu0
          %687 = vmatprep.mubr.f32.mxu0 0.0
          %688 = vmatmul.mubr.f32.gmra.mrb[0].mxu0 %v616
          %v689 = vpop.f32.mrb[0].mxu0
          %v690 = vadd.f32 %v609, %v689
          %v691 = vpop.f32.mrb[0].mxu0
          %692 = vdwg.mxu0
          %v693 = vmax.f32 %v685, 0.0
          %v694 = vmax.f32 %v690, 0.0
          %v695 = vld [vmem:[%s413] sm:$0xff]
          %v696 = vld [vmem:[%s413 + $0x8] sm:$0xff]
          %v697 = vmul.f32 %v693, %v695
          %v698 = vmul.f32 %v694, %v696
          %v699 = vld [vmem:[#allocation7] sm:$0xff]
          %v700 = vld [vmem:[#allocation7 + $0x8] sm:$0xff]
          %v701 = vld [vmem:[#allocation7 + $0x10] sm:$0xff]
          %v702 = vld [vmem:[#allocation7 + $0x18] sm:$0xff]
          %v703 = vld [vmem:[#allocation7 + $0x20] sm:$0xff]
          %v704 = vld [vmem:[#allocation7 + $0x28] sm:$0xff]
          %v705 = vld [vmem:[#allocation7 + $0x30] sm:$0xff]
          %v706 = vld [vmem:[#allocation7 + $0x38] sm:$0xff]
          %v707 = vld [vmem:[#allocation7 + $0x40] sm:$0xff]
          %v708 = vld [vmem:[#allocation7 + $0x48] sm:$0xff]
          %v709 = vld [vmem:[#allocation7 + $0x50] sm:$0xff]
          %v710 = vld [vmem:[#allocation7 + $0x58] sm:$0xff]
          %v711 = vld [vmem:[#allocation7 + $0x60] sm:$0xff]
          %v712 = vld [vmem:[#allocation7 + $0x68] sm:$0xff]
          %v713 = vld [vmem:[#allocation7 + $0x70] sm:$0xff]
          %v714 = vld [vmem:[#allocation7 + $0x78] sm:$0xff]
          %v715 = vld [vmem:[#allocation7 + $0x80] sm:$0xff]
          %v716 = vld [vmem:[#allocation7 + $0x88] sm:$0xff]
          %v717 = vld [vmem:[#allocation7 + $0x90] sm:$0xff]
          %v718 = vld [vmem:[#allocation7 + $0x98] sm:$0xff]
          %v719 = vld [vmem:[#allocation7 + $0xa0] sm:$0xff]
          %v720 = vld [vmem:[#allocation7 + $0xa8] sm:$0xff]
          %v721 = vld [vmem:[#allocation7 + $0xb0] sm:$0xff]
          %v722 = vld [vmem:[#allocation7 + $0xb8] sm:$0xff]
          %v723 = vld [vmem:[#allocation7 + $0xc0] sm:$0xff]
          %v724 = vld [vmem:[#allocation7 + $0xc8] sm:$0xff]
          %v725 = vld [vmem:[#allocation7 + $0xd0] sm:$0xff]
          %v726 = vld [vmem:[#allocation7 + $0xd8] sm:$0xff]
          %v727 = vld [vmem:[#allocation7 + $0xe0] sm:$0xff]
          %v728 = vld [vmem:[#allocation7 + $0xe8] sm:$0xff]
          %v729 = vld [vmem:[#allocation7 + $0xf0] sm:$0xff]
          %v730 = vld [vmem:[#allocation7 + $0xf8] sm:$0xff]
          %731 = vmatprep.subr.mxu0 %v700
          %732 = vmatpush1.msra.mxu0 %v699
          %733 = vmatprep.subr.mxu0 %v702
          %734 = vmatpush1.msra.mxu0 %v701
          %735 = vmatprep.subr.mxu0 %v704
          %736 = vmatpush1.msra.mxu0 %v703
          %737 = vmatprep.subr.mxu0 %v706
          %738 = vmatpush1.msra.mxu0 %v705
          %739 = vmatprep.subr.mxu0 %v708
          %740 = vmatpush1.msra.mxu0 %v707
          %741 = vmatprep.subr.mxu0 %v710
          %742 = vmatpush1.msra.mxu0 %v709
          %743 = vmatprep.subr.mxu0 %v712
          %744 = vmatpush1.msra.mxu0 %v711
          %745 = vmatprep.subr.mxu0 %v714
          %746 = vmatpush1.msra.mxu0 %v713
          %747 = vmatprep.subr.mxu0 %v716
          %748 = vmatpush1.msra.mxu0 %v715
          %749 = vmatprep.subr.mxu0 %v718
          %750 = vmatpush1.msra.mxu0 %v717
          %751 = vmatprep.subr.mxu0 %v720
          %752 = vmatpush1.msra.mxu0 %v719
          %753 = vmatprep.subr.mxu0 %v722
          %754 = vmatpush1.msra.mxu0 %v721
          %755 = vmatprep.subr.mxu0 %v724
          %756 = vmatpush1.msra.mxu0 %v723
          %757 = vmatprep.subr.mxu0 %v726
          %758 = vmatpush1.msra.mxu0 %v725
          %759 = vmatprep.subr.mxu0 %v728
          %760 = vmatpush1.msra.mxu0 %v727
          %761 = vmatprep.subr.mxu0 %v730
          %762 = vmatpush1.msra.mxu0 %v729
          %763 = vmatprep.subr.mxu0 0.0
          %764 = vmatpush1.msra.mxu0 0.0
          %765 = vmatprep.subr.mxu0 0.0
          %766 = vmatpush1.msra.mxu0 0.0
          %767 = vmatprep.subr.mxu0 0.0
          %768 = vmatpush1.msra.mxu0 0.0
          %769 = vmatprep.subr.mxu0 0.0
          %770 = vmatpush1.msra.mxu0 0.0
          %771 = vmatprep.subr.mxu0 0.0
          %772 = vmatpush1.msra.mxu0 0.0
          %773 = vmatprep.subr.mxu0 0.0
          %774 = vmatpush1.msra.mxu0 0.0
          %775 = vmatprep.subr.mxu0 0.0
          %776 = vmatpush1.msra.mxu0 0.0
          %777 = vmatprep.subr.mxu0 0.0
          %778 = vmatpush1.msra.mxu0 0.0
          %779 = vmatprep.subr.mxu0 0.0
          %780 = vmatpush1.msra.mxu0 0.0
          %781 = vmatprep.subr.mxu0 0.0
          %782 = vmatpush1.msra.mxu0 0.0
          %783 = vmatprep.subr.mxu0 0.0
          %784 = vmatpush1.msra.mxu0 0.0
          %785 = vmatprep.subr.mxu0 0.0
          %786 = vmatpush1.msra.mxu0 0.0
          %787 = vmatprep.subr.mxu0 0.0
          %788 = vmatpush1.msra.mxu0 0.0
          %789 = vmatprep.subr.mxu0 0.0
          %790 = vmatpush1.msra.mxu0 0.0
          %791 = vmatprep.subr.mxu0 0.0
          %792 = vmatpush1.msra.mxu0 0.0
          %793 = vmatprep.subr.mxu0 0.0
          %794 = vmatpush1.msra.mxu0 0.0
          %795 = vmatprep.mubr.f32.mxu0 0.0
          %796 = vmatmul.mubr.f32.gmra.mrb[0].mxu0 %v697
          %v797 = vpop.f32.mrb[0].mxu0
          %v798 = vadd.f32 0.0, %v797
          %v799 = vpop.f32.mrb[0].mxu0
          %v800 = vadd.f32 0.0, %v799
          %801 = vmatprep.mubr.f32.mxu0 0.0
          %802 = vmatmul.mubr.f32.gmra.mrb[0].mxu0 %v698
          %v803 = vpop.f32.mrb[0].mxu0
          %v804 = vadd.f32 0.0, %v803
          %v805 = vpop.f32.mrb[0].mxu0
          %v806 = vadd.f32 0.0, %v805
          %807 = vdwg.mxu0
          %808 = vst [vmem:[%s456] sm:$0xff] %v798
          %809 = vst [vmem:[%s456 + $0x8] sm:$0xff] %v800
          %810 = vst [vmem:[%s456 + $0x10] sm:$0xff] %v804
          %811 = vst [vmem:[%s456 + $0x18] sm:$0xff] %v806
        $region76: #{tpu_custom_call.1} parent=43 // pred_fallthru
          _
        %s812 = sand.u32 %s216, 1
        %s813 = scalar_lea.sflag [#allocation4], %s812
        %s814 = sand.u32 %s216, 1
        %s815 = smul.addr %s814, 32
        %s816 = scalar_lea.vmem [#allocation13], %s815
        // Predicated region
        $region77: #{tpu_custom_call.1} parent=43 // pred_check
          %p817 = pneg %p226
        $region78: #{tpu_custom_call.1} parent=43 // pred_check_branch
          %819 = sbr.rel (%p817) target = $region80
        $region79: #{tpu_custom_call.1} parent=43 // pred_region
          %s820 = smul.u32 2, %s35
          %s822 = ssub.s32 512, 512
          %823 = vsyncadd %s813, %s822
          %s824 = smul.addr %s820, 2
          %s825 = smul.addr %s34, 12
          %s826 = sadd.s32 %s824, %s825
          %s827 = smul.addr %s826, 128
          %s828 = scalar_lea.hbm %s6, %s827
          %s829 = sshll.u32 %s816, 4
          %s830 = int_to_ptr.vmem [resolvable:$true] %s829
          %835 = dma.vmem_to_hbm [thread:$0]  %s830, 512, %s828, %s813, 256, 256, 16
        $region80: #{tpu_custom_call.1} parent=43 // pred_fallthru
          _
      $region44: #{tpu_custom_call.1} parent=5 // pred_fallthru
        _
      %p836 = scmp.le.s32.totalorder 2, %s25
      // Predicated region
      $region81: #{tpu_custom_call.1} parent=5 // pred_check
        %p837 = pneg %p836
      $region82: #{tpu_custom_call.1} parent=5 // pred_check_branch
        %839 = sbr.rel (%p837) target = $region84
      $region83: #{tpu_custom_call.1} parent=5 // pred_region
        %s840 = ssub.s32 %s25, 2
        // Predicated region
        $region85: #{tpu_custom_call.1} parent=83 // pred_check
          %p841 = pneg %p232
        $region86: #{tpu_custom_call.1} parent=83 // pred_check_branch
          %843 = sbr.rel (%p841) target = $region88
        $region87: #{tpu_custom_call.1} parent=83 // pred_region
          %s844 = sand.u32 %s217, 1
          %s845 = scalar_lea.sflag [#allocation4], %s844
          %s846 = sand.u32 %s217, 1
          %s847 = smul.addr %s846, 32
          %s848 = scalar_lea.vmem [#allocation13], %s847
          %849 = dma.done %s845, 512
        $region88: #{tpu_custom_call.1} parent=83 // pred_fallthru
          _
      $region84: #{tpu_custom_call.1} parent=5 // pred_fallthru
        _
    $region6: #{tpu_custom_call.1} parent=1 // loop_footer
      %s29 = sadd.s32 1, %s25
    $region7: #{tpu_custom_call.1} parent=1 // loop_footer_branch
      %24 = sbr.rel target = $region3
    $region8: #{tpu_custom_call.1} parent=1 // loop_exit
      _
    %850 = vsyncpa [#allocation3], 1
    %s851 = scalar_lea.sflag [#allocation3], 1
    %852 = vsyncpa %s851, 1
    %853 = vsyncpa [#allocation6], 1
    %854 = vsyncpa [#allocation9], 1
    %s855 = scalar_lea.sflag [#allocation9], 1
    %856 = vsyncpa %s855, 1
    %857 = vsyncpa [#allocation12], 1
    %s858 = scalar_lea.sflag [#allocation12], 1
    %859 = vsyncpa %s858, 1
    %860 = vsyncpa [#allocation4], 1
    %s861 = scalar_lea.sflag [#allocation4], 1
    %862 = vsyncpa %s861, 1

</llo_original>
